<compile_context>
chip_gen: v6e
topology: v6e:2x2x1
jax: 0.10.0
libtpu: 0.0.40
codegen_flags: <defaults>
</compile_context>

<pallas_src>
import functools
import math

import jax
import jax.numpy as jnp
from jax.experimental import pallas as pl
from jax.experimental.pallas import tpu as pltpu


def _shift_left(v, d):
    """v shifted left by d along the lane axis (wrapped tail columns only feed
    output columns that the wrapper trims, so the wrap is harmless)."""
    if d == 0:
        return v
    return jnp.concatenate([v[:, d:], v[:, :d]], axis=-1)


def cnn_block_kernel(x_ref, w_ref, b_ref, o_ref, *, kernel_size, pool_size,
                     neg_slope, mxu_dtype):
    # x_ref: (pool, C_in, W)   polyphase streams, batch folded on lanes (W = tb*Lp)
    # w_ref: (K, C_out, C_in)  conv taps
    # b_ref: (C_out, 1)        bias (f32)
    # o_ref: (C_out, W)        pooled output -> single wide, lane-dense store
    bias = b_ref[...]

    phase_cache = {}

    def phase(ph):
        if ph not in phase_cache:
            v = x_ref[ph]                       # (C_in, W), no gratuitous upcast
            if mxu_dtype is not None:
                v = v.astype(mxu_dtype)
            phase_cache[ph] = v
        return phase_cache[ph]

    tap_cache = {}

    def tap(kk):
        if kk not in tap_cache:
            wk = w_ref[kk]                      # (C_out, C_in)
            if mxu_dtype is not None:
                wk = wk.astype(mxu_dtype)
            tap_cache[kk] = wk
        return tap_cache[kk]

    m = None
    for p in range(pool_size):
        # Conv phase p: accumulate K small MXU dots (no live im2col buffer).
        acc = None
        for kk in range(kernel_size):
            q = p + kk
            view = _shift_left(phase(q % pool_size), q // pool_size)
            contrib = jnp.dot(tap(kk), view, preferred_element_type=jnp.float32)
            acc = contrib if acc is None else acc + contrib
        y = acc + bias                                  # (C_out, W) + (C_out, 1)
        y = jnp.where(y > 0, y, neg_slope * y)          # LeakyReLU (VPU)
        m = y if m is None else jnp.maximum(m, y)       # MaxPool across phases
    o_ref[...] = m.astype(o_ref.dtype)                  # one wide store


def _choose_batch_tile(n_pad, lp, target_lanes=2048):
    """Largest batch tile whose lane width is a 128-multiple and <= target;
    prefer leaving >=2 grid steps (v7x: 2 TensorCores)."""
    cands = [tb for tb in range(1, n_pad + 1)
             if n_pad % tb == 0 and (tb * lp) % 128 == 0]
    if not cands:
        return n_pad
    small = [tb for tb in cands if tb * lp <= target_lanes]
    if small:
        multi = [tb for tb in small if n_pad // tb >= 2]
        return max(multi) if multi else max(small)
    return min(cands)


def cnn_block(x, weight, bias, pool_size, neg_slope=0.01, mxu_dtype=None):
    """x: (N, C_in, L); weight: (C_out, C_in, K); bias: (C_out,).
    Returns (N, C_out, L_pool) matching Conv1d -> LeakyReLU(0.01) -> MaxPool1d."""
    n, c_in, l = x.shape
    c_out, c_in_w, k = weight.shape
    assert c_in_w == c_in
    l_out = l - k + 1
    assert l_out >= 1
    l_pool = (l_out - pool_size) // pool_size + 1        # floor mode, no padding
    assert l_pool >= 1
    # Every valid pooled output only reads x[..., :l]; padding / lane wrap can
    # only ever touch columns that are trimmed below.
    assert l_pool * pool_size + k - 2 <= l - 1

    itemsize = jnp.dtype(x.dtype).itemsize

    # Pad length to a pool multiple and batch so all lane widths are 128-multiples.
    l_pad = -(-l // pool_size) * pool_size
    lp = l_pad // pool_size                              # pooled columns per batch row
    m_b = 128 // math.gcd(lp, 128)
    n_pad = -(-n // m_b) * m_b
    if l_pad != l or n_pad != n:
        x = jnp.pad(x, ((0, n_pad - n), (0, 0), (0, l_pad - l)))

    # Wrapper-side layout plumbing (one XLA transpose each way):
    #   x_ph[p, c, b*lp + j] = x[b, c, j*pool + p]
    x_ph = jnp.transpose(x.reshape(n_pad, c_in, lp, pool_size), (3, 1, 0, 2))
    x_ph = x_ph.reshape(pool_size, c_in, n_pad * lp)
    w3 = jnp.transpose(weight, (2, 0, 1))                # (K, C_out, C_in)
    b2 = bias.reshape(c_out, 1).astype(jnp.float32)

    tb = _choose_batch_tile(n_pad, lp)
    grid = (n_pad // tb,)
    wlanes = tb * lp

    # Explicit VMEM budget from the chosen blocks (double-buffered x/out +
    # constant w/b), with generous headroom; capped for v7x's 64 MiB VMEM.
    blk_bytes = 2 * itemsize * (pool_size * c_in + c_out) * wlanes \
        + 2 * 4 * (k * c_out * c_in + c_out)
    vmem_limit = int(min(64 * 2 ** 20, max(32 * 2 ** 20, 4 * blk_bytes)))

    kern = functools.partial(cnn_block_kernel, kernel_size=k,
                             pool_size=pool_size, neg_slope=neg_slope,
                             mxu_dtype=mxu_dtype)

    out2 = pl.pallas_call(
        kern,
        out_shape=jax.ShapeDtypeStruct((c_out, n_pad * lp), x.dtype),
        grid_spec=pltpu.PrefetchScalarGridSpec(
            num_scalar_prefetch=0,
            grid=grid,                                   # batch tiles
            in_specs=[
                pl.BlockSpec((pool_size, c_in, wlanes), lambda g: (0, 0, g)),
                pl.BlockSpec((k, c_out, c_in), lambda g: (0, 0, 0)),
                pl.BlockSpec((c_out, 1), lambda g: (0, 0)),
            ],
            out_specs=pl.BlockSpec((c_out, wlanes), lambda g: (0, g)),
        ),
        compiler_params=pltpu.CompilerParams(
            dimension_semantics=("parallel",),
            vmem_limit_bytes=vmem_limit),
    )(x_ph, w3, b2)

    # Back to PyTorch's (N, C_out, L_pool) layout; trim batch/length padding.
    out = jnp.transpose(out2.reshape(c_out, n_pad, lp), (1, 0, 2))
    return out[:n, :, :l_pool]


def cnn_block_ref(x, weight, bias, pool_size, neg_slope=0.01):
    """Pure-JAX reference matching PyTorch semantics."""
    n, c_in, l = x.shape
    c_out, _, k = weight.shape
    l_out = l - k + 1
    y = jnp.zeros((n, c_out, l_out), jnp.float32)
    for kk in range(k):
        y = y + jnp.einsum('oi,nil->nol', weight[:, :, kk], x[:, :, kk:kk + l_out])
    y = y + bias[None, :, None]
    y = jnp.where(y > 0, y, neg_slope * y)
    l_pool = (l_out - pool_size) // pool_size + 1
    y = y[:, :, :l_pool * pool_size].reshape(n, c_out, l_pool, pool_size)
    return jnp.max(y, axis=-1)


if __name__ == "__main__":
    # CNN_Block(input_channels=4, num_channels=8, kernel_size=3, pooling_size=2)
    batch, c_in, length = 2, 4, 16
    c_out, ksize, psize = 8, 3, 2

    key = jax.random.PRNGKey(0)
    kx, kw, kb = jax.random.split(key, 3)

    x = jax.random.normal(kx, (batch, c_in, length), dtype=jnp.float32)
    # Deterministic init mimicking PyTorch Conv1d default (uniform +/- 1/sqrt(fan_in)).
    bound = 1.0 / (c_in * ksize) ** 0.5
    weight = jax.random.uniform(kw, (c_out, c_in, ksize), jnp.float32, -bound, bound)
    bias = jax.random.uniform(kb, (c_out,), jnp.float32, -bound, bound)

    out = cnn_block(x, weight, bias, psize)
    out = jax.block_until_ready(out)

    ref = cnn_block_ref(x, weight, bias, psize)
    assert out.shape == (batch, c_out, (length - ksize + 1) // psize)
    assert jnp.allclose(out, ref, atol=1e-5, rtol=1e-5)

    print("KERNEL_OK")
</pallas_src>

<mosaic_0001>
module attributes {stable_mosaic.version = 11 : i64} {
  func.func @cnn_block_kernel(%arg0: i32, %arg1: memref<2x4x128xf32, #tpu.memory_space<vmem>>, %arg2: memref<3x8x4xf32, #tpu.memory_space<vmem>>, %arg3: memref<8x1xf32, #tpu.memory_space<vmem>>, %arg4: memref<8x128xf32, #tpu.memory_space<vmem>>) attributes {dimension_semantics = [#tpu.dimension_semantics<parallel>], iteration_bounds = array<i64: 1>, scalar_prefetch = 0 : i64, scratch_operands = 0 : i64, tpu.core_type = #tpu.core_type<tc>, window_params = [{transform_indices = @transform_0, window_bounds = array<i64: 2, 4, 128>}, {pipeline_mode = #tpu.pipeline_mode<synchronous>, transform_indices = @transform_1, window_bounds = array<i64: 3, 8, 4>}, {pipeline_mode = #tpu.pipeline_mode<synchronous>, transform_indices = @transform_2, window_bounds = array<i64: 8, 1>}, {transform_indices = @transform_3, window_bounds = array<i64: 8, 128>}]} {
    %c0 = arith.constant 0 : index
    %c0_0 = arith.constant 0 : index
    %0 = vector.load %arg3[%c0, %c0_0] : memref<8x1xf32, #tpu.memory_space<vmem>>, vector<8x1xf32>
    %c0_1 = arith.constant 0 : index
    %c0_2 = arith.constant 0 : index
    %c0_3 = arith.constant 0 : index
    %1 = vector.load %arg1[%c0_1, %c0_2, %c0_3] : memref<2x4x128xf32, #tpu.memory_space<vmem>>, vector<1x4x128xf32>
    %2 = vector.shape_cast %1 : vector<1x4x128xf32> to vector<4x128xf32>
    %c0_4 = arith.constant 0 : index
    %c0_5 = arith.constant 0 : index
    %c0_6 = arith.constant 0 : index
    %3 = vector.load %arg2[%c0_4, %c0_5, %c0_6] : memref<3x8x4xf32, #tpu.memory_space<vmem>>, vector<1x8x4xf32>
    %4 = vector.shape_cast %3 : vector<1x8x4xf32> to vector<8x4xf32>
    %cst = arith.constant dense<0.000000e+00> : vector<8x128xf32>
    %5 = tpu.matmul %4, %2, %cst {dimension_numbers = #tpu.dot_dimension_numbers<[1], [0], [0], [1], [0, 0, 1, 1], [], []>} : vector<8x4xf32>, vector<4x128xf32>, vector<8x128xf32> -> vector<8x128xf32>
    %c1 = arith.constant 1 : index
    %c0_7 = arith.constant 0 : index
    %c0_8 = arith.constant 0 : index
    %6 = vector.load %arg1[%c1, %c0_7, %c0_8] : memref<2x4x128xf32, #tpu.memory_space<vmem>>, vector<1x4x128xf32>
    %7 = vector.shape_cast %6 : vector<1x4x128xf32> to vector<4x128xf32>
    %c1_9 = arith.constant 1 : index
    %c0_10 = arith.constant 0 : index
    %c0_11 = arith.constant 0 : index
    %8 = vector.load %arg2[%c1_9, %c0_10, %c0_11] : memref<3x8x4xf32, #tpu.memory_space<vmem>>, vector<1x8x4xf32>
    %9 = vector.shape_cast %8 : vector<1x8x4xf32> to vector<8x4xf32>
    %cst_12 = arith.constant dense<0.000000e+00> : vector<8x128xf32>
    %10 = tpu.matmul %9, %7, %cst_12 {dimension_numbers = #tpu.dot_dimension_numbers<[1], [0], [0], [1], [0, 0, 1, 1], [], []>} : vector<8x4xf32>, vector<4x128xf32>, vector<8x128xf32> -> vector<8x128xf32>
    %11 = arith.addf %5, %10 : vector<8x128xf32>
    %12 = vector.extract_strided_slice %2 {offsets = [0, 1], sizes = [4, 127], strides = [1, 1]} : vector<4x128xf32> to vector<4x127xf32>
    %13 = vector.extract_strided_slice %2 {offsets = [0, 0], sizes = [4, 1], strides = [1, 1]} : vector<4x128xf32> to vector<4x1xf32>
    %14 = tpu.concatenate %12, %13 in 1 : vector<4x127xf32>, vector<4x1xf32> -> vector<4x128xf32>
    %c2 = arith.constant 2 : index
    %c0_13 = arith.constant 0 : index
    %c0_14 = arith.constant 0 : index
    %15 = vector.load %arg2[%c2, %c0_13, %c0_14] : memref<3x8x4xf32, #tpu.memory_space<vmem>>, vector<1x8x4xf32>
    %16 = vector.shape_cast %15 : vector<1x8x4xf32> to vector<8x4xf32>
    %cst_15 = arith.constant dense<0.000000e+00> : vector<8x128xf32>
    %17 = tpu.matmul %16, %14, %cst_15 {dimension_numbers = #tpu.dot_dimension_numbers<[1], [0], [0], [1], [0, 0, 1, 1], [], []>} : vector<8x4xf32>, vector<4x128xf32>, vector<8x128xf32> -> vector<8x128xf32>
    %18 = arith.addf %11, %17 : vector<8x128xf32>
    %19 = vector.broadcast %0 : vector<8x1xf32> to vector<8x128xf32>
    %20 = arith.addf %18, %19 : vector<8x128xf32>
    %cst_16 = arith.constant 0.000000e+00 : f32
    %21 = vector.broadcast %cst_16 : f32 to vector<8x128xf32>
    %22 = arith.cmpf ogt, %20, %21 : vector<8x128xf32>
    %cst_17 = arith.constant 0.00999999977 : f32
    %23 = vector.broadcast %cst_17 : f32 to vector<8x128xf32>
    %24 = arith.mulf %23, %20 : vector<8x128xf32>
    %25 = arith.select %22, %20, %24 : vector<8x128xi1>, vector<8x128xf32>
    %cst_18 = arith.constant dense<0.000000e+00> : vector<8x128xf32>
    %26 = tpu.matmul %4, %7, %cst_18 {dimension_numbers = #tpu.dot_dimension_numbers<[1], [0], [0], [1], [0, 0, 1, 1], [], []>} : vector<8x4xf32>, vector<4x128xf32>, vector<8x128xf32> -> vector<8x128xf32>
    %27 = vector.extract_strided_slice %2 {offsets = [0, 1], sizes = [4, 127], strides = [1, 1]} : vector<4x128xf32> to vector<4x127xf32>
    %28 = vector.extract_strided_slice %2 {offsets = [0, 0], sizes = [4, 1], strides = [1, 1]} : vector<4x128xf32> to vector<4x1xf32>
    %29 = tpu.concatenate %27, %28 in 1 : vector<4x127xf32>, vector<4x1xf32> -> vector<4x128xf32>
    %cst_19 = arith.constant dense<0.000000e+00> : vector<8x128xf32>
    %30 = tpu.matmul %9, %29, %cst_19 {dimension_numbers = #tpu.dot_dimension_numbers<[1], [0], [0], [1], [0, 0, 1, 1], [], []>} : vector<8x4xf32>, vector<4x128xf32>, vector<8x128xf32> -> vector<8x128xf32>
    %31 = arith.addf %26, %30 : vector<8x128xf32>
    %32 = vector.extract_strided_slice %7 {offsets = [0, 1], sizes = [4, 127], strides = [1, 1]} : vector<4x128xf32> to vector<4x127xf32>
    %33 = vector.extract_strided_slice %7 {offsets = [0, 0], sizes = [4, 1], strides = [1, 1]} : vector<4x128xf32> to vector<4x1xf32>
    %34 = tpu.concatenate %32, %33 in 1 : vector<4x127xf32>, vector<4x1xf32> -> vector<4x128xf32>
    %cst_20 = arith.constant dense<0.000000e+00> : vector<8x128xf32>
    %35 = tpu.matmul %16, %34, %cst_20 {dimension_numbers = #tpu.dot_dimension_numbers<[1], [0], [0], [1], [0, 0, 1, 1], [], []>} : vector<8x4xf32>, vector<4x128xf32>, vector<8x128xf32> -> vector<8x128xf32>
    %36 = arith.addf %31, %35 : vector<8x128xf32>
    %37 = vector.broadcast %0 : vector<8x1xf32> to vector<8x128xf32>
    %38 = arith.addf %36, %37 : vector<8x128xf32>
    %cst_21 = arith.constant 0.000000e+00 : f32
    %39 = vector.broadcast %cst_21 : f32 to vector<8x128xf32>
    %40 = arith.cmpf ogt, %38, %39 : vector<8x128xf32>
    %cst_22 = arith.constant 0.00999999977 : f32
    %41 = vector.broadcast %cst_22 : f32 to vector<8x128xf32>
    %42 = arith.mulf %41, %38 : vector<8x128xf32>
    %43 = arith.select %40, %38, %42 : vector<8x128xi1>, vector<8x128xf32>
    %44 = arith.maximumf %25, %43 : vector<8x128xf32>
    %c0_23 = arith.constant 0 : index
    %c0_24 = arith.constant 0 : index
    %45 = vector.load %arg4[%c0_23, %c0_24] : memref<8x128xf32, #tpu.memory_space<vmem>>, vector<8x128xf32>
    tpu.vector_store %arg4[%c0_23, %c0_24], %44 {strides = array<i32>} : memref<8x128xf32, #tpu.memory_space<vmem>>, vector<8x128xf32>,
    return
  }
  func.func @transform_0(%arg0: i32) -> (i32, i32, i32) {
    %c0_i32 = arith.constant 0 : i32
    %c0_i32_0 = arith.constant 0 : i32
    %c0_i32_1 = arith.constant 0 : i32
    return %c0_i32, %c0_i32_0, %arg0 : i32, i32, i32
  }
  func.func @transform_1(%arg0: i32) -> (i32, i32, i32) {
    %c0_i32 = arith.constant 0 : i32
    %c0_i32_0 = arith.constant 0 : i32
    %c0_i32_1 = arith.constant 0 : i32
    %c0_i32_2 = arith.constant 0 : i32
    return %c0_i32, %c0_i32_0, %c0_i32_1 : i32, i32, i32
  }
  func.func @transform_2(%arg0: i32) -> (i32, i32) {
    %c0_i32 = arith.constant 0 : i32
    %c0_i32_0 = arith.constant 0 : i32
    %c0_i32_1 = arith.constant 0 : i32
    return %c0_i32, %c0_i32_0 : i32, i32
  }
  func.func @transform_3(%arg0: i32) -> (i32, i32) {
    %c0_i32 = arith.constant 0 : i32
    %c0_i32_0 = arith.constant 0 : i32
    return %c0_i32, %arg0 : i32, i32
  }
}

</mosaic_0001>

<llo_original>
// kernel: tpu_custom_call.1
$region0: #{tpu_custom_call.1}
  #allocation0 [shape = 'u32[]', space=smem, size = 0x4, offset = 0x4, fixed_abs, tag = 'smem constant byte address 0x4 - core index']
  #allocation1 [shape = 'u32[144,128]{1,0:T(1,128)}', space=vmem, size = 0x12000, scoped, tag = 'internal scratch']
  %s0 = inlined_call_operand.vmem [shape: f32[2,4,128], index: 0, kind: input, shape index: {}]
  %s1 = inlined_call_operand.vmem [shape: f32[3,8,4], index: 1, kind: input, shape index: {}]
  %s2 = inlined_call_operand.vmem [shape: f32[8,1], index: 2, kind: input, shape index: {}]
  %s3 = inlined_call_operand.hbm [shape: f32[8,128], index: 3, kind: output, shape index: {}]
  %s4 = sld [smem:[#allocation0]]
  $region22: #{tpu_custom_call.1} parent=0
    _
  %s6 = ssub.s32 1, %s4
  %s7 = scalar_select 0, %s6, %s4
  $region1: #{tpu_custom_call.1} parent=0
    #allocation2 [shape = 'u8[4096]{0}', space=vmem, size = 0x1000, scoped, tag = 'output window, operand 0, single buffered']
    #allocation3 [shape = 's32[1]{0}', space=sflag, size = 0x4, scoped, tag = 'scoped memory for tpu_custom_call.1']
    %8 = vsyncpa [#allocation3], 0
    // Predicated region
    $region2: #{tpu_custom_call.1} parent=1 // pred_check
      _
    $region3: #{tpu_custom_call.1} parent=1 // pred_check_branch
      %10 = sbr.rel (0) target = $region5
    $region4: #{tpu_custom_call.1} parent=1 // pred_region
      _
    $region5: #{tpu_custom_call.1} parent=1 // pred_fallthru
      _
    // Predicated region
    $region6: #{tpu_custom_call.1} parent=1 // pred_check
      _
    $region7: #{tpu_custom_call.1} parent=1 // pred_check_branch
      %12 = sbr.rel (0) target = $region9
    $region8: #{tpu_custom_call.1} parent=1 // pred_region
      _
    $region9: #{tpu_custom_call.1} parent=1 // pred_fallthru
      _
    // Predicated region
    $region10: #{tpu_custom_call.1} parent=1 // pred_check
      _
    $region11: #{tpu_custom_call.1} parent=1 // pred_check_branch
      %14 = sbr.rel (0) target = $region13
    $region12: #{tpu_custom_call.1} parent=1 // pred_region
      _
    $region13: #{tpu_custom_call.1} parent=1 // pred_fallthru
      _
    %v15 = vld [vmem:[%s2] sm:$0xff]
    %v16 = vld [vmem:[%s0] sm:$0xf]
    %v17 = vld [vmem:[%s1] sm:$0xff]
    %s18 = scalar_lea.vmem %s0, 4
    %v19 = vld [vmem:[%s18] sm:$0xf]
    %s20 = scalar_lea.vmem %s1, 8
    %v21 = vld [vmem:[%s20] sm:$0xff]
    %vm22 = vcmask 31744
    %v24 = vsel %vm22, %v21, 0
    %vm26 = vcmask 1043456
    %v28 = vsel %vm26, %v19, 0
    %30 = vmatprep.subr.mxu0 0.0
    %31 = vmatpush1.msra.mxu0 0.0
    %32 = vmatprep.subr.mxu0 0.0
    %33 = vmatpush1.msra.mxu0 0.0
    %34 = vmatprep.subr.mxu0 0.0
    %35 = vmatpush1.msra.mxu0 0.0
    %36 = vmatprep.subr.mxu0 0.0
    %37 = vmatpush1.msra.mxu0 0.0
    %38 = vmatprep.subr.mxu0 0.0
    %39 = vmatpush1.msra.mxu0 0.0
    %40 = vmatprep.subr.mxu0 0.0
    %41 = vmatpush1.msra.mxu0 0.0
    %42 = vmatprep.subr.mxu0 0.0
    %43 = vmatpush1.msra.mxu0 0.0
    %44 = vmatprep.subr.mxu0 0.0
    %45 = vmatpush1.msra.mxu0 0.0
    %46 = vmatprep.subr.mxu0 0.0
    %47 = vmatpush1.msra.mxu0 0.0
    %48 = vmatprep.subr.mxu0 0.0
    %49 = vmatpush1.msra.mxu0 0.0
    %50 = vmatprep.subr.mxu0 0.0
    %51 = vmatpush1.msra.mxu0 0.0
    %52 = vmatprep.subr.mxu0 0.0
    %53 = vmatpush1.msra.mxu0 0.0
    %54 = vmatprep.subr.mxu0 0.0
    %55 = vmatpush1.msra.mxu0 0.0
    %56 = vmatprep.subr.mxu0 0.0
    %57 = vmatpush1.msra.mxu0 0.0
    %58 = vmatprep.subr.mxu0 0.0
    %59 = vmatpush1.msra.mxu0 0.0
    %60 = vmatprep.subr.mxu0 0.0
    %61 = vmatpush1.msra.mxu0 %v28
    %62 = vmatprep.subr.mxu0 0.0
    %63 = vmatpush2.msra.mxu0 0.0
    %64 = vmatprep.subr.mxu0 0.0
    %65 = vmatpush2.msra.mxu0 0.0
    %66 = vmatprep.subr.mxu0 0.0
    %67 = vmatpush2.msra.mxu0 0.0
    %68 = vmatprep.subr.mxu0 0.0
    %69 = vmatpush2.msra.mxu0 0.0
    %70 = vmatprep.subr.mxu0 0.0
    %71 = vmatpush2.msra.mxu0 0.0
    %72 = vmatprep.subr.mxu0 0.0
    %73 = vmatpush2.msra.mxu0 0.0
    %74 = vmatprep.subr.mxu0 0.0
    %75 = vmatpush2.msra.mxu0 0.0
    %76 = vmatprep.subr.mxu0 0.0
    %77 = vmatpush2.msra.mxu0 0.0
    %78 = vmatprep.subr.mxu0 0.0
    %79 = vmatpush2.msra.mxu0 0.0
    %80 = vmatprep.subr.mxu0 0.0
    %81 = vmatpush2.msra.mxu0 0.0
    %82 = vmatprep.subr.mxu0 0.0
    %83 = vmatpush2.msra.mxu0 0.0
    %84 = vmatprep.subr.mxu0 0.0
    %85 = vmatpush2.msra.mxu0 0.0
    %86 = vmatprep.subr.mxu0 0.0
    %87 = vmatpush2.msra.mxu0 0.0
    %88 = vmatprep.subr.mxu0 0.0
    %89 = vmatpush2.msra.mxu0 0.0
    %90 = vmatprep.subr.mxu0 0.0
    %91 = vmatpush2.msra.mxu0 0.0
    %92 = vmatprep.subr.mxu0 0.0
    %93 = vmatpush2.msra.mxu0 0.0
    %94 = vmatprep.mubr.f32.mxu0 0.0
    %95 = vmatmul.mubr.f32.gmra.mxu0 %v24
    %v96 = vpop.f32.mrf.mxu0
    %v97 = vadd.f32 0.0, %v96
    %v98 = vpop.f32.mrf.mxu0
    %99 = vdwg.mxu0
    %v101 = vsel %vm22, %v17, 0
    %v104 = vsel %vm26, %v16, 0
    %106 = vmatprep.subr.mxu0 0.0
    %107 = vmatpush1.msra.mxu0 0.0
    %108 = vmatprep.subr.mxu0 0.0
    %109 = vmatpush1.msra.mxu0 0.0
    %110 = vmatprep.subr.mxu0 0.0
    %111 = vmatpush1.msra.mxu0 0.0
    %112 = vmatprep.subr.mxu0 0.0
    %113 = vmatpush1.msra.mxu0 0.0
    %114 = vmatprep.subr.mxu0 0.0
    %115 = vmatpush1.msra.mxu0 0.0
    %116 = vmatprep.subr.mxu0 0.0
    %117 = vmatpush1.msra.mxu0 0.0
    %118 = vmatprep.subr.mxu0 0.0
    %119 = vmatpush1.msra.mxu0 0.0
    %120 = vmatprep.subr.mxu0 0.0
    %121 = vmatpush1.msra.mxu0 0.0
    %122 = vmatprep.subr.mxu0 0.0
    %123 = vmatpush1.msra.mxu0 0.0
    %124 = vmatprep.subr.mxu0 0.0
    %125 = vmatpush1.msra.mxu0 0.0
    %126 = vmatprep.subr.mxu0 0.0
    %127 = vmatpush1.msra.mxu0 0.0
    %128 = vmatprep.subr.mxu0 0.0
    %129 = vmatpush1.msra.mxu0 0.0
    %130 = vmatprep.subr.mxu0 0.0
    %131 = vmatpush1.msra.mxu0 0.0
    %132 = vmatprep.subr.mxu0 0.0
    %133 = vmatpush1.msra.mxu0 0.0
    %134 = vmatprep.subr.mxu0 0.0
    %135 = vmatpush1.msra.mxu0 0.0
    %136 = vmatprep.subr.mxu0 0.0
    %137 = vmatpush1.msra.mxu0 %v104
    %138 = vmatprep.subr.mxu0 0.0
    %139 = vmatpush2.msra.mxu0 0.0
    %140 = vmatprep.subr.mxu0 0.0
    %141 = vmatpush2.msra.mxu0 0.0
    %142 = vmatprep.subr.mxu0 0.0
    %143 = vmatpush2.msra.mxu0 0.0
    %144 = vmatprep.subr.mxu0 0.0
    %145 = vmatpush2.msra.mxu0 0.0
    %146 = vmatprep.subr.mxu0 0.0
    %147 = vmatpush2.msra.mxu0 0.0
    %148 = vmatprep.subr.mxu0 0.0
    %149 = vmatpush2.msra.mxu0 0.0
    %150 = vmatprep.subr.mxu0 0.0
    %151 = vmatpush2.msra.mxu0 0.0
    %152 = vmatprep.subr.mxu0 0.0
    %153 = vmatpush2.msra.mxu0 0.0
    %154 = vmatprep.subr.mxu0 0.0
    %155 = vmatpush2.msra.mxu0 0.0
    %156 = vmatprep.subr.mxu0 0.0
    %157 = vmatpush2.msra.mxu0 0.0
    %158 = vmatprep.subr.mxu0 0.0
    %159 = vmatpush2.msra.mxu0 0.0
    %160 = vmatprep.subr.mxu0 0.0
    %161 = vmatpush2.msra.mxu0 0.0
    %162 = vmatprep.subr.mxu0 0.0
    %163 = vmatpush2.msra.mxu0 0.0
    %164 = vmatprep.subr.mxu0 0.0
    %165 = vmatpush2.msra.mxu0 0.0
    %166 = vmatprep.subr.mxu0 0.0
    %167 = vmatpush2.msra.mxu0 0.0
    %168 = vmatprep.subr.mxu0 0.0
    %169 = vmatpush2.msra.mxu0 0.0
    %170 = vmatprep.mubr.f32.mxu0 0.0
    %171 = vmatmul.mubr.f32.gmra.mxu0 %v101
    %v172 = vpop.f32.mrf.mxu0
    %v173 = vadd.f32 %v97, %v172
    %v174 = vpop.f32.mrf.mxu0
    %175 = vdwg.mxu0
    %176 = vrot.lane.b32.xlu0 %v16, 127
    %v177 = vpop.permute.xlu0 %176
    %s179 = scalar_lea.vmem %s1, 16
    %v180 = vld [vmem:[%s179] sm:$0xff]
    %v182 = vsel %vm22, %v180, 0
    %v185 = vsel %vm26, %v177, 0
    %187 = vmatprep.subr.mxu0 0.0
    %188 = vmatpush1.msra.mxu0 0.0
    %189 = vmatprep.subr.mxu0 0.0
    %190 = vmatpush1.msra.mxu0 0.0
    %191 = vmatprep.subr.mxu0 0.0
    %192 = vmatpush1.msra.mxu0 0.0
    %193 = vmatprep.subr.mxu0 0.0
    %194 = vmatpush1.msra.mxu0 0.0
    %195 = vmatprep.subr.mxu0 0.0
    %196 = vmatpush1.msra.mxu0 0.0
    %197 = vmatprep.subr.mxu0 0.0
    %198 = vmatpush1.msra.mxu0 0.0
    %199 = vmatprep.subr.mxu0 0.0
    %200 = vmatpush1.msra.mxu0 0.0
    %201 = vmatprep.subr.mxu0 0.0
    %202 = vmatpush1.msra.mxu0 0.0
    %203 = vmatprep.subr.mxu0 0.0
    %204 = vmatpush1.msra.mxu0 0.0
    %205 = vmatprep.subr.mxu0 0.0
    %206 = vmatpush1.msra.mxu0 0.0
    %207 = vmatprep.subr.mxu0 0.0
    %208 = vmatpush1.msra.mxu0 0.0
    %209 = vmatprep.subr.mxu0 0.0
    %210 = vmatpush1.msra.mxu0 0.0
    %211 = vmatprep.subr.mxu0 0.0
    %212 = vmatpush1.msra.mxu0 0.0
    %213 = vmatprep.subr.mxu0 0.0
    %214 = vmatpush1.msra.mxu0 0.0
    %215 = vmatprep.subr.mxu0 0.0
    %216 = vmatpush1.msra.mxu0 0.0
    %217 = vmatprep.subr.mxu0 0.0
    %218 = vmatpush1.msra.mxu0 %v185
    %219 = vmatprep.subr.mxu0 0.0
    %220 = vmatpush2.msra.mxu0 0.0
    %221 = vmatprep.subr.mxu0 0.0
    %222 = vmatpush2.msra.mxu0 0.0
    %223 = vmatprep.subr.mxu0 0.0
    %224 = vmatpush2.msra.mxu0 0.0
    %225 = vmatprep.subr.mxu0 0.0
    %226 = vmatpush2.msra.mxu0 0.0
    %227 = vmatprep.subr.mxu0 0.0
    %228 = vmatpush2.msra.mxu0 0.0
    %229 = vmatprep.subr.mxu0 0.0
    %230 = vmatpush2.msra.mxu0 0.0
    %231 = vmatprep.subr.mxu0 0.0
    %232 = vmatpush2.msra.mxu0 0.0
    %233 = vmatprep.subr.mxu0 0.0
    %234 = vmatpush2.msra.mxu0 0.0
    %235 = vmatprep.subr.mxu0 0.0
    %236 = vmatpush2.msra.mxu0 0.0
    %237 = vmatprep.subr.mxu0 0.0
    %238 = vmatpush2.msra.mxu0 0.0
    %239 = vmatprep.subr.mxu0 0.0
    %240 = vmatpush2.msra.mxu0 0.0
    %241 = vmatprep.subr.mxu0 0.0
    %242 = vmatpush2.msra.mxu0 0.0
    %243 = vmatprep.subr.mxu0 0.0
    %244 = vmatpush2.msra.mxu0 0.0
    %245 = vmatprep.subr.mxu0 0.0
    %246 = vmatpush2.msra.mxu0 0.0
    %247 = vmatprep.subr.mxu0 0.0
    %248 = vmatpush2.msra.mxu0 0.0
    %249 = vmatprep.subr.mxu0 0.0
    %250 = vmatpush2.msra.mxu0 0.0
    %251 = vmatprep.mubr.f32.mxu0 0.0
    %252 = vmatmul.mubr.f32.gmra.mxu0 %v182
    %v253 = vpop.f32.mrf.mxu0
    %v254 = vadd.f32 0.0, %v253
    %v255 = vpop.f32.mrf.mxu0
    %256 = vdwg.mxu0
    %v257 = vadd.f32 %v173, %v254
    %259 = vset.pattern.permute.xlu0 0
    %260 = vperm.xlu0 %259, %v15
    %v261 = vpop.permute.xlu0 %260
    %v263 = vadd.f32 %v257, %v261
    %vm264 = vcmp.gt.f32.partialorder %v263, 0.0
    %v265 = vmul.f32 %v263, 0.01
    %v266 = vsel %vm264, %v263, %v265
    %267 = vmatprep.subr.mxu0 0.0
    %268 = vmatpush1.msra.mxu0 0.0
    %269 = vmatprep.subr.mxu0 0.0
    %270 = vmatpush1.msra.mxu0 0.0
    %271 = vmatprep.subr.mxu0 0.0
    %272 = vmatpush1.msra.mxu0 0.0
    %273 = vmatprep.subr.mxu0 0.0
    %274 = vmatpush1.msra.mxu0 0.0
    %275 = vmatprep.subr.mxu0 0.0
    %276 = vmatpush1.msra.mxu0 0.0
    %277 = vmatprep.subr.mxu0 0.0
    %278 = vmatpush1.msra.mxu0 0.0
    %279 = vmatprep.subr.mxu0 0.0
    %280 = vmatpush1.msra.mxu0 0.0
    %281 = vmatprep.subr.mxu0 0.0
    %282 = vmatpush1.msra.mxu0 0.0
    %283 = vmatprep.subr.mxu0 0.0
    %284 = vmatpush1.msra.mxu0 0.0
    %285 = vmatprep.subr.mxu0 0.0
    %286 = vmatpush1.msra.mxu0 0.0
    %287 = vmatprep.subr.mxu0 0.0
    %288 = vmatpush1.msra.mxu0 0.0
    %289 = vmatprep.subr.mxu0 0.0
    %290 = vmatpush1.msra.mxu0 0.0
    %291 = vmatprep.subr.mxu0 0.0
    %292 = vmatpush1.msra.mxu0 0.0
    %293 = vmatprep.subr.mxu0 0.0
    %294 = vmatpush1.msra.mxu0 0.0
    %295 = vmatprep.subr.mxu0 0.0
    %296 = vmatpush1.msra.mxu0 0.0
    %297 = vmatprep.subr.mxu0 0.0
    %298 = vmatpush1.msra.mxu0 %v185
    %299 = vmatprep.subr.mxu0 0.0
    %300 = vmatpush2.msra.mxu0 0.0
    %301 = vmatprep.subr.mxu0 0.0
    %302 = vmatpush2.msra.mxu0 0.0
    %303 = vmatprep.subr.mxu0 0.0
    %304 = vmatpush2.msra.mxu0 0.0
    %305 = vmatprep.subr.mxu0 0.0
    %306 = vmatpush2.msra.mxu0 0.0
    %307 = vmatprep.subr.mxu0 0.0
    %308 = vmatpush2.msra.mxu0 0.0
    %309 = vmatprep.subr.mxu0 0.0
    %310 = vmatpush2.msra.mxu0 0.0
    %311 = vmatprep.subr.mxu0 0.0
    %312 = vmatpush2.msra.mxu0 0.0
    %313 = vmatprep.subr.mxu0 0.0
    %314 = vmatpush2.msra.mxu0 0.0
    %315 = vmatprep.subr.mxu0 0.0
    %316 = vmatpush2.msra.mxu0 0.0
    %317 = vmatprep.subr.mxu0 0.0
    %318 = vmatpush2.msra.mxu0 0.0
    %319 = vmatprep.subr.mxu0 0.0
    %320 = vmatpush2.msra.mxu0 0.0
    %321 = vmatprep.subr.mxu0 0.0
    %322 = vmatpush2.msra.mxu0 0.0
    %323 = vmatprep.subr.mxu0 0.0
    %324 = vmatpush2.msra.mxu0 0.0
    %325 = vmatprep.subr.mxu0 0.0
    %326 = vmatpush2.msra.mxu0 0.0
    %327 = vmatprep.subr.mxu0 0.0
    %328 = vmatpush2.msra.mxu0 0.0
    %329 = vmatprep.subr.mxu0 0.0
    %330 = vmatpush2.msra.mxu0 0.0
    %331 = vmatprep.mubr.f32.mxu0 0.0
    %332 = vmatmul.mubr.f32.gmra.mxu0 %v24
    %v333 = vpop.f32.mrf.mxu0
    %v334 = vadd.f32 0.0, %v333
    %v335 = vpop.f32.mrf.mxu0
    %336 = vdwg.mxu0
    %337 = vmatprep.subr.mxu0 0.0
    %338 = vmatpush1.msra.mxu0 0.0
    %339 = vmatprep.subr.mxu0 0.0
    %340 = vmatpush1.msra.mxu0 0.0
    %341 = vmatprep.subr.mxu0 0.0
    %342 = vmatpush1.msra.mxu0 0.0
    %343 = vmatprep.subr.mxu0 0.0
    %344 = vmatpush1.msra.mxu0 0.0
    %345 = vmatprep.subr.mxu0 0.0
    %346 = vmatpush1.msra.mxu0 0.0
    %347 = vmatprep.subr.mxu0 0.0
    %348 = vmatpush1.msra.mxu0 0.0
    %349 = vmatprep.subr.mxu0 0.0
    %350 = vmatpush1.msra.mxu0 0.0
    %351 = vmatprep.subr.mxu0 0.0
    %352 = vmatpush1.msra.mxu0 0.0
    %353 = vmatprep.subr.mxu0 0.0
    %354 = vmatpush1.msra.mxu0 0.0
    %355 = vmatprep.subr.mxu0 0.0
    %356 = vmatpush1.msra.mxu0 0.0
    %357 = vmatprep.subr.mxu0 0.0
    %358 = vmatpush1.msra.mxu0 0.0
    %359 = vmatprep.subr.mxu0 0.0
    %360 = vmatpush1.msra.mxu0 0.0
    %361 = vmatprep.subr.mxu0 0.0
    %362 = vmatpush1.msra.mxu0 0.0
    %363 = vmatprep.subr.mxu0 0.0
    %364 = vmatpush1.msra.mxu0 0.0
    %365 = vmatprep.subr.mxu0 0.0
    %366 = vmatpush1.msra.mxu0 0.0
    %367 = vmatprep.subr.mxu0 0.0
    %368 = vmatpush1.msra.mxu0 %v28
    %369 = vmatprep.subr.mxu0 0.0
    %370 = vmatpush2.msra.mxu0 0.0
    %371 = vmatprep.subr.mxu0 0.0
    %372 = vmatpush2.msra.mxu0 0.0
    %373 = vmatprep.subr.mxu0 0.0
    %374 = vmatpush2.msra.mxu0 0.0
    %375 = vmatprep.subr.mxu0 0.0
    %376 = vmatpush2.msra.mxu0 0.0
    %377 = vmatprep.subr.mxu0 0.0
    %378 = vmatpush2.msra.mxu0 0.0
    %379 = vmatprep.subr.mxu0 0.0
    %380 = vmatpush2.msra.mxu0 0.0
    %381 = vmatprep.subr.mxu0 0.0
    %382 = vmatpush2.msra.mxu0 0.0
    %383 = vmatprep.subr.mxu0 0.0
    %384 = vmatpush2.msra.mxu0 0.0
    %385 = vmatprep.subr.mxu0 0.0
    %386 = vmatpush2.msra.mxu0 0.0
    %387 = vmatprep.subr.mxu0 0.0
    %388 = vmatpush2.msra.mxu0 0.0
    %389 = vmatprep.subr.mxu0 0.0
    %390 = vmatpush2.msra.mxu0 0.0
    %391 = vmatprep.subr.mxu0 0.0
    %392 = vmatpush2.msra.mxu0 0.0
    %393 = vmatprep.subr.mxu0 0.0
    %394 = vmatpush2.msra.mxu0 0.0
    %395 = vmatprep.subr.mxu0 0.0
    %396 = vmatpush2.msra.mxu0 0.0
    %397 = vmatprep.subr.mxu0 0.0
    %398 = vmatpush2.msra.mxu0 0.0
    %399 = vmatprep.subr.mxu0 0.0
    %400 = vmatpush2.msra.mxu0 0.0
    %401 = vmatprep.mubr.f32.mxu0 0.0
    %402 = vmatmul.mubr.f32.gmra.mxu0 %v101
    %v403 = vpop.f32.mrf.mxu0
    %v404 = vadd.f32 %v334, %v403
    %v405 = vpop.f32.mrf.mxu0
    %406 = vdwg.mxu0
    %407 = vrot.lane.b32.xlu0 %v19, 127
    %v408 = vpop.permute.xlu0 %407
    %v411 = vsel %vm26, %v408, 0
    %413 = vmatprep.subr.mxu0 0.0
    %414 = vmatpush1.msra.mxu0 0.0
    %415 = vmatprep.subr.mxu0 0.0
    %416 = vmatpush1.msra.mxu0 0.0
    %417 = vmatprep.subr.mxu0 0.0
    %418 = vmatpush1.msra.mxu0 0.0
    %419 = vmatprep.subr.mxu0 0.0
    %420 = vmatpush1.msra.mxu0 0.0
    %421 = vmatprep.subr.mxu0 0.0
    %422 = vmatpush1.msra.mxu0 0.0
    %423 = vmatprep.subr.mxu0 0.0
    %424 = vmatpush1.msra.mxu0 0.0
    %425 = vmatprep.subr.mxu0 0.0
    %426 = vmatpush1.msra.mxu0 0.0
    %427 = vmatprep.subr.mxu0 0.0
    %428 = vmatpush1.msra.mxu0 0.0
    %429 = vmatprep.subr.mxu0 0.0
    %430 = vmatpush1.msra.mxu0 0.0
    %431 = vmatprep.subr.mxu0 0.0
    %432 = vmatpush1.msra.mxu0 0.0
    %433 = vmatprep.subr.mxu0 0.0
    %434 = vmatpush1.msra.mxu0 0.0
    %435 = vmatprep.subr.mxu0 0.0
    %436 = vmatpush1.msra.mxu0 0.0
    %437 = vmatprep.subr.mxu0 0.0
    %438 = vmatpush1.msra.mxu0 0.0
    %439 = vmatprep.subr.mxu0 0.0
    %440 = vmatpush1.msra.mxu0 0.0
    %441 = vmatprep.subr.mxu0 0.0
    %442 = vmatpush1.msra.mxu0 0.0
    %443 = vmatprep.subr.mxu0 0.0
    %444 = vmatpush1.msra.mxu0 %v411
    %445 = vmatprep.subr.mxu0 0.0
    %446 = vmatpush2.msra.mxu0 0.0
    %447 = vmatprep.subr.mxu0 0.0
    %448 = vmatpush2.msra.mxu0 0.0
    %449 = vmatprep.subr.mxu0 0.0
    %450 = vmatpush2.msra.mxu0 0.0
    %451 = vmatprep.subr.mxu0 0.0
    %452 = vmatpush2.msra.mxu0 0.0
    %453 = vmatprep.subr.mxu0 0.0
    %454 = vmatpush2.msra.mxu0 0.0
    %455 = vmatprep.subr.mxu0 0.0
    %456 = vmatpush2.msra.mxu0 0.0
    %457 = vmatprep.subr.mxu0 0.0
    %458 = vmatpush2.msra.mxu0 0.0
    %459 = vmatprep.subr.mxu0 0.0
    %460 = vmatpush2.msra.mxu0 0.0
    %461 = vmatprep.subr.mxu0 0.0
    %462 = vmatpush2.msra.mxu0 0.0
    %463 = vmatprep.subr.mxu0 0.0
    %464 = vmatpush2.msra.mxu0 0.0
    %465 = vmatprep.subr.mxu0 0.0
    %466 = vmatpush2.msra.mxu0 0.0
    %467 = vmatprep.subr.mxu0 0.0
    %468 = vmatpush2.msra.mxu0 0.0
    %469 = vmatprep.subr.mxu0 0.0
    %470 = vmatpush2.msra.mxu0 0.0
    %471 = vmatprep.subr.mxu0 0.0
    %472 = vmatpush2.msra.mxu0 0.0
    %473 = vmatprep.subr.mxu0 0.0
    %474 = vmatpush2.msra.mxu0 0.0
    %475 = vmatprep.subr.mxu0 0.0
    %476 = vmatpush2.msra.mxu0 0.0
    %477 = vmatprep.mubr.f32.mxu0 0.0
    %478 = vmatmul.mubr.f32.gmra.mxu0 %v182
    %v479 = vpop.f32.mrf.mxu0
    %v480 = vadd.f32 0.0, %v479
    %v481 = vpop.f32.mrf.mxu0
    %482 = vdwg.mxu0
    %v483 = vadd.f32 %v404, %v480
    %v484 = vadd.f32 %v483, %v261
    %vm485 = vcmp.gt.f32.partialorder %v484, 0.0
    %v486 = vmul.f32 %v484, 0.01
    %v487 = vsel %vm485, %v484, %v486
    %v488 = vmax.f32 %v266, %v487
    %489 = vst [vmem:[#allocation2] sm:$0xff] %v488
    // Predicated region
    $region14: #{tpu_custom_call.1} parent=1 // pred_check
      _
    $region15: #{tpu_custom_call.1} parent=1 // pred_check_branch
      %491 = sbr.rel (0) target = $region17
    $region16: #{tpu_custom_call.1} parent=1 // pred_region
      %s493 = ssub.s32 128, 128
      %494 = vsyncadd [#allocation3], %s493
      %s496 = sshll.u32 [#allocation2], 4
      %s497 = int_to_ptr.vmem [resolvable:$true] %s496
      %499 = dma.vmem_to_hbm [thread:$0]  %s497, 128, %s3, [#allocation3]
    $region17: #{tpu_custom_call.1} parent=1 // pred_fallthru
      _
    // Predicated region
    $region18: #{tpu_custom_call.1} parent=1 // pred_check
      _
    $region19: #{tpu_custom_call.1} parent=1 // pred_check_branch
      %501 = sbr.rel (0) target = $region21
    $region20: #{tpu_custom_call.1} parent=1 // pred_region
      %502 = dma.done [#allocation3], 128
    $region21: #{tpu_custom_call.1} parent=1 // pred_fallthru
      _
    %503 = vsyncpa [#allocation3], 1

</llo_original>
